<compile_context>
chip_gen: v7x
topology: tpu7x:2x2x1
jax: 0.10.0
libtpu: 0.0.40
codegen_flags: <defaults>
</compile_context>

<pallas_src>
import jax
import jax.numpy as jnp
from jax import lax
from jax.experimental import pallas as pl
from jax.experimental.pallas import tpu as pltpu

N_CLASSES = 6          # fixed by the PyTorch module (one_hot num_classes=6)
C_PAD = 8              # classes padded to one sublane group
LANES = 128
NUM_SPLITS = 2         # "parallel" grid axis: 2 TCs on v7x, harmless on 1-TC chips
DEFAULT_TILE_N = 8192  # 8*8192*4 B = 256 KiB per logits buffer
NEG = -1e30            # pad value for fake classes / tail rows (softmax -> exactly 0)


def _round_up(x, m):
    return ((x + m - 1) // m) * m


def _make_conf_kernel(tile_n, steps_per_core, n_valid):
    def kernel(logits_ref, target_ref, conf_ref):
        # logits_ref : (C_PAD, tile_n) f32 - classes on sublanes, samples on lanes
        # target_ref : (1, tile_n) int32 class ids (-1 on padded tail)
        # conf_ref   : (C_PAD, LANES) f32 accumulator; conf_ref[j, i] = C[i, j]
        s = pl.program_id(1)

        @pl.when(s == 0)
        def _init():
            conf_ref[...] = jnp.zeros_like(conf_ref)

        x = logits_ref[...]
        tgt = target_ref[...]

        # softmax over the class (sublane) axis; padded class rows are NEG -> p == 0
        m = jnp.max(x, axis=0, keepdims=True)
        e = jnp.exp(x - m)
        p = e / jnp.sum(e, axis=0, keepdims=True)            # (C_PAD, tile_n)

        # mask out padded tail columns (beyond the true batch size)
        col0 = (pl.program_id(0) * steps_per_core + s) * tile_n
        col = col0 + lax.broadcasted_iota(jnp.int32, (1, tile_n), 1)
        p = jnp.where(col < n_valid, p, 0.0)

        # VPU confusion-matrix accumulation (no MXU):
        #   C[i, j] = sum_n [target_n == i] * p[j, n]
        # stored transposed: predicted class j on sublanes, true class i on lanes.
        acc = conf_ref[...]
        lane = lax.broadcasted_iota(jnp.int32, (C_PAD, LANES), 1)
        for i in range(N_CLASSES):                            # unrolled, 6 classes
            col_sum = jnp.sum(jnp.where(tgt == i, p, 0.0),
                              axis=1, keepdims=True)          # (C_PAD, 1)
            acc = acc + jnp.where(lane == i, col_sum, 0.0)    # place at lane i
        conf_ref[...] = acc

    return kernel


def qwk_metric(output, target, *, tile_n=DEFAULT_TILE_N):
    """JAX/Pallas equivalent of QWKMetric(binned=False)(output, target)."""
    n, c = output.shape
    assert c == N_CLASSES

    tile = min(tile_n, _round_up(n, LANES))
    n_pad = _round_up(n, NUM_SPLITS * tile)
    steps_per_core = n_pad // (NUM_SPLITS * tile)

    # Layout plumbing: lane-dense transposed logits (C_PAD, n_pad) and int32 ids.
    x = jnp.pad(output.astype(jnp.float32),
                ((0, n_pad - n), (0, C_PAD - c)),
                constant_values=NEG).T                        # (C_PAD, n_pad)
    t = jnp.pad(target.reshape(1, -1).astype(jnp.int32),
                ((0, 0), (0, n_pad - n)),
                constant_values=-1)                           # (1, n_pad)

    kernel = _make_conf_kernel(tile, steps_per_core, n)

    partials = pl.pallas_call(
        kernel,
        grid=(NUM_SPLITS, steps_per_core),
        in_specs=[
            pl.BlockSpec((C_PAD, tile),
                         lambda cr, s: (0, cr * steps_per_core + s)),
            pl.BlockSpec((1, tile),
                         lambda cr, s: (0, cr * steps_per_core + s)),
        ],
        out_specs=pl.BlockSpec((None, C_PAD, LANES), lambda cr, s: (cr, 0, 0)),
        out_shape=jax.ShapeDtypeStruct((NUM_SPLITS, C_PAD, LANES), jnp.float32),
        compiler_params=pltpu.CompilerParams(
            dimension_semantics=("parallel", "arbitrary"),
            vmem_limit_bytes=32 * 1024 * 1024,
        ),
    )(x, t)

    # Cheap finalize in JAX glue: combine per-core partials, build hists/E/weights.
    conf_t = jnp.sum(partials, axis=0)                        # (C_PAD, LANES)
    conf = conf_t[:N_CLASSES, :N_CLASSES].T                   # conf[i, j] = C[i, j]
    hist_true = jnp.sum(conf, axis=1, keepdims=True)          # (6, 1) = sum one-hot target
    hist_pred = jnp.sum(conf, axis=0, keepdims=True)          # (1, 6) = sum softmax probs
    e_mat = hist_true @ hist_pred / jnp.sum(conf)
    w = jnp.arange(N_CLASSES, dtype=jnp.float32) / (N_CLASSES - 1)
    weights = (w[None, :] - w[:, None]) ** 2
    return 1.0 - jnp.sum(weights * conf) / jnp.sum(weights * e_mat)


def _qwk_reference(output, target):
    """Pure-JAX reference mirroring the PyTorch module, for validation."""
    output = output.astype(jnp.float32)
    t = jax.nn.one_hot(target.reshape(-1), N_CLASSES, dtype=output.dtype)
    p = jax.nn.softmax(output, axis=1)
    w = jnp.arange(N_CLASSES, dtype=jnp.float32) / (N_CLASSES - 1)
    weights = (w[None, :] - w[:, None]) ** 2
    C = (p.T @ t).T
    hist_true = jnp.sum(t, axis=0)[:, None]
    hist_pred = jnp.sum(p, axis=0)[:, None]
    E = hist_true @ hist_pred.T
    E = E / jnp.sum(C)
    return 1.0 - jnp.sum(weights * C) / jnp.sum(weights * E)


if __name__ == "__main__":
    key = jax.random.PRNGKey(0)
    k1, k2 = jax.random.split(key)
    # matches: output = torch.rand(10, 6); target = torch.randint(0, 6, (10, 1)).squeeze()
    output = jax.random.uniform(k1, (10, N_CLASSES), dtype=jnp.float32)
    target = jax.random.randint(k2, (10,), 0, N_CLASSES, dtype=jnp.int32)

    qwk = qwk_metric(output, target)
    jax.block_until_ready(qwk)

    ref = _qwk_reference(output, target)
    assert jnp.allclose(qwk, ref, atol=1e-5, rtol=1e-5), (qwk, ref)

    print("KERNEL_OK")
</pallas_src>

<mosaic_0001>
module attributes {stable_mosaic.version = 11 : i64} {
  func.func @kernel(%arg0: i32, %arg1: i32, %arg2: memref<8x128xf32, #tpu.memory_space<vmem>>, %arg3: memref<1x128xi32, #tpu.memory_space<vmem>>, %arg4: memref<1x8x128xf32, #tpu.memory_space<vmem>>) attributes {dimension_semantics = [#tpu.dimension_semantics<parallel>, #tpu.dimension_semantics<arbitrary>], iteration_bounds = array<i64: 2, 1>, scalar_prefetch = 0 : i64, scratch_operands = 0 : i64, tpu.core_type = #tpu.core_type<tc>, window_params = [{transform_indices = @transform_0, window_bounds = array<i64: 8, 128>}, {transform_indices = @transform_1, window_bounds = array<i64: 1, 128>}, {transform_indices = @transform_2, window_bounds = array<i64: 1, 8, 128>}]} {
    %c0_i32 = arith.constant 0 : i32
    %0 = arith.cmpi eq, %arg1, %c0_i32 : i32
    %1 = arith.extui %0 : i1 to i32
    %c0_i32_0 = arith.constant 0 : i32
    %2 = arith.cmpi ne, %1, %c0_i32_0 : i32
    scf.if %2 {
      %cst_38 = arith.constant 0.000000e+00 : f32
      %122 = vector.broadcast %cst_38 : f32 to vector<8x128xf32>
      %c0_39 = arith.constant 0 : index
      %c0_40 = arith.constant 0 : index
      %c0_41 = arith.constant 0 : index
      %123 = vector.load %arg4[%c0_39, %c0_40, %c0_41] : memref<1x8x128xf32, #tpu.memory_space<vmem>>, vector<1x8x128xf32>
      %124 = vector.shape_cast %123 : vector<1x8x128xf32> to vector<8x128xf32>
      %125 = vector.shape_cast %122 : vector<8x128xf32> to vector<1x8x128xf32>
      tpu.vector_store %arg4[%c0_39, %c0_40, %c0_41], %125 {strides = array<i32>} : memref<1x8x128xf32, #tpu.memory_space<vmem>>, vector<1x8x128xf32>,
    } else {
    }
    %c0 = arith.constant 0 : index
    %c0_1 = arith.constant 0 : index
    %3 = vector.load %arg2[%c0, %c0_1] : memref<8x128xf32, #tpu.memory_space<vmem>>, vector<8x128xf32>
    %c0_2 = arith.constant 0 : index
    %c0_3 = arith.constant 0 : index
    %4 = vector.load %arg3[%c0_2, %c0_3] : memref<1x128xi32, #tpu.memory_space<vmem>>, vector<1x128xi32>
    %cst = arith.constant dense<0xFF800000> : vector<128xf32>
    %5 = vector.multi_reduction <maximumf>, %3, %cst [0] : vector<8x128xf32> to vector<128xf32>
    %6 = vector.shape_cast %5 : vector<128xf32> to vector<1x128xf32>
    %7 = vector.broadcast %6 : vector<1x128xf32> to vector<8x128xf32>
    %8 = arith.subf %3, %7 : vector<8x128xf32>
    %9 = math.exp %8 : vector<8x128xf32>
    %cst_4 = arith.constant dense<0.000000e+00> : vector<128xf32>
    %10 = vector.multi_reduction <add>, %9, %cst_4 [0] : vector<8x128xf32> to vector<128xf32>
    %11 = vector.shape_cast %10 : vector<128xf32> to vector<1x128xf32>
    %12 = vector.broadcast %11 : vector<1x128xf32> to vector<8x128xf32>
    %13 = arith.divf %9, %12 : vector<8x128xf32>
    %c1_i32 = arith.constant 1 : i32
    %14 = arith.muli %arg0, %c1_i32 : i32
    %15 = arith.addi %14, %arg1 : i32
    %c128_i32 = arith.constant 128 : i32
    %16 = arith.muli %15, %c128_i32 : i32
    %17 = tpu.iota {dimensions = array<i32: 1>} : vector<1x128xi32>
    %18 = vector.broadcast %16 : i32 to vector<1x128xi32>
    %19 = arith.addi %18, %17 : vector<1x128xi32>
    %c10_i32 = arith.constant 10 : i32
    %20 = vector.broadcast %c10_i32 : i32 to vector<1x128xi32>
    %21 = arith.cmpi slt, %19, %20 : vector<1x128xi32>
    %cst_5 = arith.constant 0.000000e+00 : f32
    %22 = vector.shape_cast %21 : vector<1x128xi1> to vector<1x128xi1>
    %23 = vector.broadcast %22 : vector<1x128xi1> to vector<8x128xi1>
    %24 = vector.broadcast %cst_5 : f32 to vector<8x128xf32>
    %25 = arith.select %23, %13, %24 : vector<8x128xi1>, vector<8x128xf32>
    %c0_6 = arith.constant 0 : index
    %c0_7 = arith.constant 0 : index
    %c0_8 = arith.constant 0 : index
    %26 = vector.load %arg4[%c0_6, %c0_7, %c0_8] : memref<1x8x128xf32, #tpu.memory_space<vmem>>, vector<1x8x128xf32>
    %27 = vector.shape_cast %26 : vector<1x8x128xf32> to vector<8x128xf32>
    %28 = tpu.iota {dimensions = array<i32: 1>} : vector<8x128xi32>
    %c0_i32_9 = arith.constant 0 : i32
    %29 = vector.broadcast %c0_i32_9 : i32 to vector<1x128xi32>
    %30 = arith.cmpi eq, %4, %29 : vector<1x128xi32>
    %cst_10 = arith.constant 0.000000e+00 : f32
    %31 = vector.shape_cast %30 : vector<1x128xi1> to vector<1x128xi1>
    %32 = vector.broadcast %31 : vector<1x128xi1> to vector<8x128xi1>
    %33 = vector.broadcast %cst_10 : f32 to vector<8x128xf32>
    %34 = arith.select %32, %25, %33 : vector<8x128xi1>, vector<8x128xf32>
    %cst_11 = arith.constant dense<0.000000e+00> : vector<8xf32>
    %35 = vector.multi_reduction <add>, %34, %cst_11 [1] : vector<8x128xf32> to vector<8xf32>
    %36 = vector.shape_cast %35 : vector<8xf32> to vector<8x1xf32>
    %c0_i32_12 = arith.constant 0 : i32
    %37 = vector.broadcast %c0_i32_12 : i32 to vector<8x128xi32>
    %38 = arith.cmpi eq, %28, %37 : vector<8x128xi32>
    %cst_13 = arith.constant 0.000000e+00 : f32
    %39 = vector.shape_cast %36 : vector<8x1xf32> to vector<8x1xf32>
    %40 = vector.broadcast %39 : vector<8x1xf32> to vector<8x128xf32>
    %41 = vector.broadcast %cst_13 : f32 to vector<8x128xf32>
    %42 = arith.select %38, %40, %41 : vector<8x128xi1>, vector<8x128xf32>
    %43 = arith.addf %27, %42 : vector<8x128xf32>
    %c1_i32_14 = arith.constant 1 : i32
    %44 = vector.broadcast %c1_i32_14 : i32 to vector<1x128xi32>
    %45 = arith.cmpi eq, %4, %44 : vector<1x128xi32>
    %cst_15 = arith.constant 0.000000e+00 : f32
    %46 = vector.shape_cast %45 : vector<1x128xi1> to vector<1x128xi1>
    %47 = vector.broadcast %46 : vector<1x128xi1> to vector<8x128xi1>
    %48 = vector.broadcast %cst_15 : f32 to vector<8x128xf32>
    %49 = arith.select %47, %25, %48 : vector<8x128xi1>, vector<8x128xf32>
    %cst_16 = arith.constant dense<0.000000e+00> : vector<8xf32>
    %50 = vector.multi_reduction <add>, %49, %cst_16 [1] : vector<8x128xf32> to vector<8xf32>
    %51 = vector.shape_cast %50 : vector<8xf32> to vector<8x1xf32>
    %c1_i32_17 = arith.constant 1 : i32
    %52 = vector.broadcast %c1_i32_17 : i32 to vector<8x128xi32>
    %53 = arith.cmpi eq, %28, %52 : vector<8x128xi32>
    %cst_18 = arith.constant 0.000000e+00 : f32
    %54 = vector.shape_cast %51 : vector<8x1xf32> to vector<8x1xf32>
    %55 = vector.broadcast %54 : vector<8x1xf32> to vector<8x128xf32>
    %56 = vector.broadcast %cst_18 : f32 to vector<8x128xf32>
    %57 = arith.select %53, %55, %56 : vector<8x128xi1>, vector<8x128xf32>
    %58 = arith.addf %43, %57 : vector<8x128xf32>
    %c2_i32 = arith.constant 2 : i32
    %59 = vector.broadcast %c2_i32 : i32 to vector<1x128xi32>
    %60 = arith.cmpi eq, %4, %59 : vector<1x128xi32>
    %cst_19 = arith.constant 0.000000e+00 : f32
    %61 = vector.shape_cast %60 : vector<1x128xi1> to vector<1x128xi1>
    %62 = vector.broadcast %61 : vector<1x128xi1> to vector<8x128xi1>
    %63 = vector.broadcast %cst_19 : f32 to vector<8x128xf32>
    %64 = arith.select %62, %25, %63 : vector<8x128xi1>, vector<8x128xf32>
    %cst_20 = arith.constant dense<0.000000e+00> : vector<8xf32>
    %65 = vector.multi_reduction <add>, %64, %cst_20 [1] : vector<8x128xf32> to vector<8xf32>
    %66 = vector.shape_cast %65 : vector<8xf32> to vector<8x1xf32>
    %c2_i32_21 = arith.constant 2 : i32
    %67 = vector.broadcast %c2_i32_21 : i32 to vector<8x128xi32>
    %68 = arith.cmpi eq, %28, %67 : vector<8x128xi32>
    %cst_22 = arith.constant 0.000000e+00 : f32
    %69 = vector.shape_cast %66 : vector<8x1xf32> to vector<8x1xf32>
    %70 = vector.broadcast %69 : vector<8x1xf32> to vector<8x128xf32>
    %71 = vector.broadcast %cst_22 : f32 to vector<8x128xf32>
    %72 = arith.select %68, %70, %71 : vector<8x128xi1>, vector<8x128xf32>
    %73 = arith.addf %58, %72 : vector<8x128xf32>
    %c3_i32 = arith.constant 3 : i32
    %74 = vector.broadcast %c3_i32 : i32 to vector<1x128xi32>
    %75 = arith.cmpi eq, %4, %74 : vector<1x128xi32>
    %cst_23 = arith.constant 0.000000e+00 : f32
    %76 = vector.shape_cast %75 : vector<1x128xi1> to vector<1x128xi1>
    %77 = vector.broadcast %76 : vector<1x128xi1> to vector<8x128xi1>
    %78 = vector.broadcast %cst_23 : f32 to vector<8x128xf32>
    %79 = arith.select %77, %25, %78 : vector<8x128xi1>, vector<8x128xf32>
    %cst_24 = arith.constant dense<0.000000e+00> : vector<8xf32>
    %80 = vector.multi_reduction <add>, %79, %cst_24 [1] : vector<8x128xf32> to vector<8xf32>
    %81 = vector.shape_cast %80 : vector<8xf32> to vector<8x1xf32>
    %c3_i32_25 = arith.constant 3 : i32
    %82 = vector.broadcast %c3_i32_25 : i32 to vector<8x128xi32>
    %83 = arith.cmpi eq, %28, %82 : vector<8x128xi32>
    %cst_26 = arith.constant 0.000000e+00 : f32
    %84 = vector.shape_cast %81 : vector<8x1xf32> to vector<8x1xf32>
    %85 = vector.broadcast %84 : vector<8x1xf32> to vector<8x128xf32>
    %86 = vector.broadcast %cst_26 : f32 to vector<8x128xf32>
    %87 = arith.select %83, %85, %86 : vector<8x128xi1>, vector<8x128xf32>
    %88 = arith.addf %73, %87 : vector<8x128xf32>
    %c4_i32 = arith.constant 4 : i32
    %89 = vector.broadcast %c4_i32 : i32 to vector<1x128xi32>
    %90 = arith.cmpi eq, %4, %89 : vector<1x128xi32>
    %cst_27 = arith.constant 0.000000e+00 : f32
    %91 = vector.shape_cast %90 : vector<1x128xi1> to vector<1x128xi1>
    %92 = vector.broadcast %91 : vector<1x128xi1> to vector<8x128xi1>
    %93 = vector.broadcast %cst_27 : f32 to vector<8x128xf32>
    %94 = arith.select %92, %25, %93 : vector<8x128xi1>, vector<8x128xf32>
    %cst_28 = arith.constant dense<0.000000e+00> : vector<8xf32>
    %95 = vector.multi_reduction <add>, %94, %cst_28 [1] : vector<8x128xf32> to vector<8xf32>
    %96 = vector.shape_cast %95 : vector<8xf32> to vector<8x1xf32>
    %c4_i32_29 = arith.constant 4 : i32
    %97 = vector.broadcast %c4_i32_29 : i32 to vector<8x128xi32>
    %98 = arith.cmpi eq, %28, %97 : vector<8x128xi32>
    %cst_30 = arith.constant 0.000000e+00 : f32
    %99 = vector.shape_cast %96 : vector<8x1xf32> to vector<8x1xf32>
    %100 = vector.broadcast %99 : vector<8x1xf32> to vector<8x128xf32>
    %101 = vector.broadcast %cst_30 : f32 to vector<8x128xf32>
    %102 = arith.select %98, %100, %101 : vector<8x128xi1>, vector<8x128xf32>
    %103 = arith.addf %88, %102 : vector<8x128xf32>
    %c5_i32 = arith.constant 5 : i32
    %104 = vector.broadcast %c5_i32 : i32 to vector<1x128xi32>
    %105 = arith.cmpi eq, %4, %104 : vector<1x128xi32>
    %cst_31 = arith.constant 0.000000e+00 : f32
    %106 = vector.shape_cast %105 : vector<1x128xi1> to vector<1x128xi1>
    %107 = vector.broadcast %106 : vector<1x128xi1> to vector<8x128xi1>
    %108 = vector.broadcast %cst_31 : f32 to vector<8x128xf32>
    %109 = arith.select %107, %25, %108 : vector<8x128xi1>, vector<8x128xf32>
    %cst_32 = arith.constant dense<0.000000e+00> : vector<8xf32>
    %110 = vector.multi_reduction <add>, %109, %cst_32 [1] : vector<8x128xf32> to vector<8xf32>
    %111 = vector.shape_cast %110 : vector<8xf32> to vector<8x1xf32>
    %c5_i32_33 = arith.constant 5 : i32
    %112 = vector.broadcast %c5_i32_33 : i32 to vector<8x128xi32>
    %113 = arith.cmpi eq, %28, %112 : vector<8x128xi32>
    %cst_34 = arith.constant 0.000000e+00 : f32
    %114 = vector.shape_cast %111 : vector<8x1xf32> to vector<8x1xf32>
    %115 = vector.broadcast %114 : vector<8x1xf32> to vector<8x128xf32>
    %116 = vector.broadcast %cst_34 : f32 to vector<8x128xf32>
    %117 = arith.select %113, %115, %116 : vector<8x128xi1>, vector<8x128xf32>
    %118 = arith.addf %103, %117 : vector<8x128xf32>
    %c0_35 = arith.constant 0 : index
    %c0_36 = arith.constant 0 : index
    %c0_37 = arith.constant 0 : index
    %119 = vector.load %arg4[%c0_35, %c0_36, %c0_37] : memref<1x8x128xf32, #tpu.memory_space<vmem>>, vector<1x8x128xf32>
    %120 = vector.shape_cast %119 : vector<1x8x128xf32> to vector<8x128xf32>
    %121 = vector.shape_cast %118 : vector<8x128xf32> to vector<1x8x128xf32>
    tpu.vector_store %arg4[%c0_35, %c0_36, %c0_37], %121 {strides = array<i32>} : memref<1x8x128xf32, #tpu.memory_space<vmem>>, vector<1x8x128xf32>,
    return
  }
  func.func @transform_0(%arg0: i32, %arg1: i32) -> (i32, i32) {
    %c1_i32 = arith.constant 1 : i32
    %0 = arith.muli %arg0, %c1_i32 : i32
    %1 = arith.addi %0, %arg1 : i32
    %c0_i32 = arith.constant 0 : i32
    %c0_i32_0 = arith.constant 0 : i32
    return %c0_i32, %1 : i32, i32
  }
  func.func @transform_1(%arg0: i32, %arg1: i32) -> (i32, i32) {
    %c1_i32 = arith.constant 1 : i32
    %0 = arith.muli %arg0, %c1_i32 : i32
    %1 = arith.addi %0, %arg1 : i32
    %c0_i32 = arith.constant 0 : i32
    %c0_i32_0 = arith.constant 0 : i32
    return %c0_i32, %1 : i32, i32
  }
  func.func @transform_2(%arg0: i32, %arg1: i32) -> (i32, i32, i32) {
    %c0_i32 = arith.constant 0 : i32
    %c0_i32_0 = arith.constant 0 : i32
    %c0_i32_1 = arith.constant 0 : i32
    return %arg0, %c0_i32, %c0_i32_0 : i32, i32, i32
  }
}

</mosaic_0001>

<llo_original>
// kernel: tpu_custom_call.1
$region0: #{tpu_custom_call.1}
  #allocation0 [shape = 'u32[]', space=smem, size = 0x4, offset = 0x4, fixed_abs, tag = 'smem constant byte address 0x4 - core index']
  #allocation1 [shape = 'u32[144,128]{1,0:T(1,128)}', space=vmem, size = 0x12000, scoped, tag = 'internal scratch']
  %s0 = inlined_call_operand.hbm [shape: f32[8,256], index: 0, kind: input, shape index: {}]
  %s1 = inlined_call_operand.vmem [shape: s32[1,256], index: 1, kind: input, shape index: {}]
  %s2 = inlined_call_operand.hbm [shape: f32[2,8,128], index: 2, kind: output, shape index: {}]
  %s3 = sld [smem:[#allocation0]]
  $region49: #{tpu_custom_call.1} parent=0
    _
  %s5 = ssub.s32 1, %s3
  %s6 = scalar_select 0, %s5, %s3
  $region1: #{tpu_custom_call.1} parent=0
    #allocation2 [shape = 'u8[8192]{0}', space=vmem, size = 0x2000, scoped, tag = 'input window, operand 0']
    #allocation3 [shape = 's32[2]{0}', space=sflag, size = 0x8, scoped, tag = 'scoped memory for tpu_custom_call.1']
    #allocation4 [shape = 's32[2]{0}', space=sflag, size = 0x8, scoped, tag = 'scoped memory for tpu_custom_call.1']
    #allocation5 [shape = 'u8[8192]{0}', space=vmem, size = 0x2000, scoped, tag = 'output window, operand 0']
    %7 = vsyncpa [#allocation3], 0
    %s8 = scalar_lea.sflag [#allocation3], 1
    %9 = vsyncpa %s8, 0
    %10 = vsyncpa [#allocation4], 0
    %s11 = scalar_lea.sflag [#allocation4], 1
    %12 = vsyncpa %s11, 0
    loop: start=0, step=1, limit=4
    $region2: #{tpu_custom_call.1} parent=1 // loop_pre_header
      _
    $region3: #{tpu_custom_call.1} parent=1 // loop_header
      %s14 = sphi 0, %s18
      %p15 = scmp.ge.s32.totalorder %s14, 4
      %s21 = sphi 0, %s33
      %s22 = sphi 0, %s29
      %s23 = sphi 0, %s21
      %s24 = sphi 0, %s22
      %s25 = sphi 0, %s23
      %s26 = sphi 0, %s24
      %s38 = sphi 0, %s40
      %s41 = sphi 0, %s38
      %s42 = sphi 0, %s41
      %s58 = sphi 0, %s42
      %s66 = sphi 0, %s68
      %s69 = sphi 0, %s66
      %s70 = sphi 0, %s69
      %s86 = sphi 0, %s70
      %s92 = sphi 0, %s94
      %s95 = sphi 0, %s92
      %s96 = sphi 0, %s95
      %s112 = sphi 0, %s96
    $region4: #{tpu_custom_call.1} parent=1 // loop_header_branch
      %17 = sbr.rel (%p15) target = $region8
    $region5: #{tpu_custom_call.1} parent=1 // loop_body
      %s19 = ssub.s32 %s14, 1
      %s20 = ssub.s32 %s14, 2
      %s27 = sadd.s32 1, %s22
      %p28 = scmp.ge.s32.totalorder %s27, 1
      %s29 = scalar_select %p28, 0, %s27
      %s30 = sadd.s32 1, %s21
      %s31 = scalar_select %p28, %s30, %s21
      %p32 = scmp.ge.s32.totalorder %s31, 2
      %s33 = scalar_select %p32, 0, %s31
      %s34 = sadd.s32 %s21, %s22
      %s35 = sadd.s32 %s33, %s29
      %s36 = ssub.s32 %s34, %s35
      %p37 = scmp.eq.s32.totalorder %s36, 0
      %s39 = sadd.s32 %s38, 1
      %s40 = scalar_select %p37, %s38, %s39
      %p43 = pneg %p37
      %p44 = scmp.eq.s32.totalorder %s14, 1
      %p45 = por %p43, %p44
      %p46 = scmp.ne.s32.totalorder %s38, %s41
      %p47 = scmp.eq.s32.totalorder %s14, 0
      %p48 = por %p46, %p47
      %p49 = scmp.ne.s32.totalorder %s38, %s41
      %p50 = scmp.eq.s32.totalorder %s19, 1
      %p51 = por %p49, %p50
      %p52 = scmp.ne.s32.totalorder %s41, %s42
      %p53 = scmp.eq.s32.totalorder %s19, 0
      %p54 = por %p52, %p53
      %p55 = scmp.ne.s32.totalorder %s41, %s42
      %p56 = scmp.eq.s32.totalorder %s20, 1
      %p57 = por %p55, %p56
      %p59 = scmp.ne.s32.totalorder %s42, %s58
      %p60 = scmp.eq.s32.totalorder %s20, 0
      %p61 = por %p59, %p60
      %s62 = sadd.s32 %s21, %s22
      %s63 = sadd.s32 %s33, %s29
      %s64 = ssub.s32 %s62, %s63
      %p65 = scmp.eq.s32.totalorder %s64, 0
      %s67 = sadd.s32 %s66, 1
      %s68 = scalar_select %p65, %s66, %s67
      %p71 = pneg %p65
      %p72 = scmp.eq.s32.totalorder %s14, 1
      %p73 = por %p71, %p72
      %p74 = scmp.ne.s32.totalorder %s66, %s69
      %p75 = scmp.eq.s32.totalorder %s14, 0
      %p76 = por %p74, %p75
      %p77 = scmp.ne.s32.totalorder %s66, %s69
      %p78 = scmp.eq.s32.totalorder %s19, 1
      %p79 = por %p77, %p78
      %p80 = scmp.ne.s32.totalorder %s69, %s70
      %p81 = scmp.eq.s32.totalorder %s19, 0
      %p82 = por %p80, %p81
      %p83 = scmp.ne.s32.totalorder %s69, %s70
      %p84 = scmp.eq.s32.totalorder %s20, 1
      %p85 = por %p83, %p84
      %p87 = scmp.ne.s32.totalorder %s70, %s86
      %p88 = scmp.eq.s32.totalorder %s20, 0
      %p89 = por %p87, %p88
      %s90 = ssub.s32 %s21, %s33
      %p91 = scmp.eq.s32.totalorder %s90, 0
      %s93 = sadd.s32 %s92, 1
      %s94 = scalar_select %p91, %s92, %s93
      %p97 = pneg %p91
      %p98 = scmp.eq.s32.totalorder %s14, 1
      %p99 = por %p97, %p98
      %p100 = scmp.ne.s32.totalorder %s92, %s95
      %p101 = scmp.eq.s32.totalorder %s14, 0
      %p102 = por %p100, %p101
      %p103 = scmp.ne.s32.totalorder %s92, %s95
      %p104 = scmp.eq.s32.totalorder %s19, 1
      %p105 = por %p103, %p104
      %p106 = scmp.ne.s32.totalorder %s95, %s96
      %p107 = scmp.eq.s32.totalorder %s19, 0
      %p108 = por %p106, %p107
      %p109 = scmp.ne.s32.totalorder %s95, %s96
      %p110 = scmp.eq.s32.totalorder %s20, 1
      %p111 = por %p109, %p110
      %p113 = scmp.ne.s32.totalorder %s96, %s112
      %p114 = scmp.eq.s32.totalorder %s20, 0
      %p115 = por %p113, %p114
      %p116 = scmp.le.s32.totalorder 1, %s14
      %p117 = scmp.lt.s32.totalorder %s14, 3
      %p118 = pnand %p116, %p117
      %p119 = pneg %p118
      // Predicated region
      $region9: #{tpu_custom_call.1} parent=5 // pred_check
        _
      $region10: #{tpu_custom_call.1} parent=5 // pred_check_branch
        %121 = sbr.rel (%p118) target = $region12
      $region11: #{tpu_custom_call.1} parent=5 // pred_region
        %s122 = ssub.s32 %s14, 1
      $region12: #{tpu_custom_call.1} parent=5 // pred_fallthru
        _
      %p123 = scmp.lt.s32.totalorder %s14, 2
      // Predicated region
      $region13: #{tpu_custom_call.1} parent=5 // pred_check
        %p124 = pneg %p123
      $region14: #{tpu_custom_call.1} parent=5 // pred_check_branch
        %126 = sbr.rel (%p124) target = $region16
      $region15: #{tpu_custom_call.1} parent=5 // pred_region
        // Predicated region
        $region17: #{tpu_custom_call.1} parent=15 // pred_check
          %p127 = pneg %p48
        $region18: #{tpu_custom_call.1} parent=15 // pred_check_branch
          %129 = sbr.rel (%p127) target = $region20
        $region19: #{tpu_custom_call.1} parent=15 // pred_region
          %s130 = sand.u32 %s38, 1
          %s131 = scalar_lea.sflag [#allocation3], %s130
          %s132 = sand.u32 %s38, 1
          %s133 = smul.addr %s132, 8
          %s134 = scalar_lea.vmem [#allocation2], %s133
          %s135 = sadd.s32 %s21, %s22
          %s137 = ssub.s32 128, 128
          %138 = vsyncadd %s131, %s137
          %s139 = smul.addr %s135, 128
          %s140 = scalar_lea.hbm %s0, %s139
          %s142 = sshll.u32 %s134, 4
          %s143 = int_to_ptr.vmem [resolvable:$true] %s142
          %145 = dma.hbm_to_vmem [thread:$0]  %s140, 128, %s143, %s131
        $region20: #{tpu_custom_call.1} parent=15 // pred_fallthru
          _
        // Predicated region
        $region21: #{tpu_custom_call.1} parent=15 // pred_check
          %p146 = pneg %p76
        $region22: #{tpu_custom_call.1} parent=15 // pred_check_branch
          %148 = sbr.rel (%p146) target = $region24
        $region23: #{tpu_custom_call.1} parent=15 // pred_region
          %s149 = sadd.s32 %s21, %s22
          %p150 = scmp.lt.s32.totalorder %s149, 1
          %s151 = scalar_select %p150, %s149, 1
          %s152 = scalar_lea.vmem %s1, %s151
          %s153 = sadd.s32 %s21, %s22
        $region24: #{tpu_custom_call.1} parent=15 // pred_fallthru
          _
      $region16: #{tpu_custom_call.1} parent=5 // pred_fallthru
        _
      %p154 = scmp.le.s32.totalorder 1, %s14
      %p155 = scmp.lt.s32.totalorder %s14, 3
      %p156 = pnand %p154, %p155
      %p157 = pneg %p156
      // Predicated region
      $region25: #{tpu_custom_call.1} parent=5 // pred_check
        _
      $region26: #{tpu_custom_call.1} parent=5 // pred_check_branch
        %159 = sbr.rel (%p156) target = $region28
      $region27: #{tpu_custom_call.1} parent=5 // pred_region
        %s160 = ssub.s32 %s14, 1
        %s161 = sand.u32 %s41, 1
        %s162 = scalar_lea.sflag [#allocation3], %s161
        %s163 = sand.u32 %s41, 1
        %s164 = smul.addr %s163, 8
        %s165 = scalar_lea.vmem [#allocation2], %s164
        // Predicated region
        $region29: #{tpu_custom_call.1} parent=27 // pred_check
          %p166 = pneg %p54
        $region30: #{tpu_custom_call.1} parent=27 // pred_check_branch
          %168 = sbr.rel (%p166) target = $region32
        $region31: #{tpu_custom_call.1} parent=27 // pred_region
          %169 = dma.done %s162, 128
        $region32: #{tpu_custom_call.1} parent=27 // pred_fallthru
          _
        %s170 = sand.u32 %s41, 1
        %s171 = scalar_lea.sflag [#allocation3], %s170
        %s172 = sand.u32 %s41, 1
        %s173 = smul.addr %s172, 8
        %s174 = scalar_lea.vmem [#allocation2], %s173
        %p175 = pneg %p54
        %p176 = pneg %p51
        %s177 = sadd.s32 %s23, %s24
        %p178 = scmp.lt.s32.totalorder %s177, 1
        %s179 = scalar_select %p178, %s177, 1
        %s180 = scalar_lea.vmem %s1, %s179
        %p181 = pneg %p82
        %p182 = pneg %p79
        %p183 = pneg %p108
        %p184 = pneg %p105
        %s185 = sand.u32 %s95, 1
        %s186 = scalar_lea.sflag [#allocation4], %s185
        %s187 = sand.u32 %s95, 1
        %s188 = smul.addr %s187, 8
        %s189 = scalar_lea.vmem [#allocation5], %s188
        %s190 = sadd.s32 %s23, %s24
        %s191 = sadd.s32 %s23, %s24
        %p192 = scmp.lt.s32.totalorder %s191, 1
        %s193 = scalar_select %p192, %s191, 1
        %s194 = scalar_lea.vmem %s1, %s193
        %s195 = sadd.s32 %s23, %s24
        %p196 = scmp.eq.s32.totalorder %s24, 0
        // Predicated region
        $region33: #{tpu_custom_call.1} parent=27 // pred_check
          %p197 = pneg %p196
        $region34: #{tpu_custom_call.1} parent=27 // pred_check_branch
          %199 = sbr.rel (%p197) target = $region36
        $region35: #{tpu_custom_call.1} parent=27 // pred_region
          %200 = vst [vmem:[%s189] sm:$0xff] 0.0
        $region36: #{tpu_custom_call.1} parent=27 // pred_fallthru
          _
        %v201 = vld [vmem:[%s165] sm:$0xff]
        %v202 = vld [vmem:[%s194] sm:$0x1]
        %v203 = vrot.slane %v201, 4
        %v204 = vmax.f32 %v201, %v203
        %v205 = vrot.slane %v204, 2
        %v206 = vmax.f32 %v204, %v205
        %v207 = vrot.slane %v206, 1
        %v208 = vmax.f32 %v206, %v207
        %v209 = vsub.f32 %v201, %v208
        %v210 = vmul.f32 %v209, 1.442695
        %v211 = vpow.pop %v210
        %v212 = vrot.slane %v211, 4
        %v213 = vadd.f32 %v211, %v212
        %v214 = vrot.slane %v213, 2
        %v215 = vadd.f32 %v213, %v214
        %v216 = vrot.slane %v215, 1
        %v217 = vadd.f32 %v215, %v216
        %v218 = vrcp.pop %v217
        %v219 = vmul.f32 %v211, %v218
        %s220 = sadd.s32 %s23, %s24
        %s221 = smul.u32 %s220, 128
        %v222 = vlaneseq
        %v223 = vand.u32 %v222, 127
        %v224 = vstv %s221
        %v225 = vadd.s32 %v224, %v223
        %vm226 = vcmp.lt.s32.totalorder %v225, 10
        %v227 = vsel %vm226, 1, 0
        %vm228 = vcmp.eq.s32.totalorder %v227, 1
        %v229 = vsel %vm228, %v219, 0.0
        %v230 = vld [vmem:[%s189] sm:$0xff]
        %vm231 = vcmp.eq.s32.totalorder %v202, 0
        %v232 = vsel %vm231, 1, 0
        %v233 = vlaneseq
        %v234 = vshrl.u32 %v233, 7
        %v235 = vsub.s32 0, %v234
        %v236 = vrot.slane %v232, %v235
        %vm237 = vcmp.eq.s32.totalorder %v236, 1
        %v238 = vsel %vm237, %v229, 0.0
        %239 = vadd.xlane.f32.xlu0 %v238
        %v240 = vpop.xlane.xlu0 %239
        %vm241 = vcmp.eq.s32.totalorder %v223, 0
        %v242 = vsel %vm241, %v240, 0.0
        %v243 = vadd.f32 %v230, %v242
        %vm244 = vcmp.eq.s32.totalorder %v202, 1
        %v245 = vsel %vm244, 1, 0
        %v246 = vlaneseq
        %v247 = vshrl.u32 %v246, 7
        %v248 = vsub.s32 0, %v247
        %v249 = vrot.slane %v245, %v248
        %vm250 = vcmp.eq.s32.totalorder %v249, 1
        %v251 = vsel %vm250, %v229, 0.0
        %252 = vadd.xlane.f32.xlu0 %v251
        %v253 = vpop.xlane.xlu0 %252
        %vm254 = vcmp.eq.s32.totalorder %v223, 1
        %v255 = vsel %vm254, %v253, 0.0
        %v256 = vadd.f32 %v243, %v255
        %vm257 = vcmp.eq.s32.totalorder %v202, 2
        %v258 = vsel %vm257, 1, 0
        %v259 = vlaneseq
        %v260 = vshrl.u32 %v259, 7
        %v261 = vsub.s32 0, %v260
        %v262 = vrot.slane %v258, %v261
        %vm263 = vcmp.eq.s32.totalorder %v262, 1
        %v264 = vsel %vm263, %v229, 0.0
        %265 = vadd.xlane.f32.xlu0 %v264
        %v266 = vpop.xlane.xlu0 %265
        %vm267 = vcmp.eq.s32.totalorder %v223, 2
        %v268 = vsel %vm267, %v266, 0.0
        %v269 = vadd.f32 %v256, %v268
        %vm270 = vcmp.eq.s32.totalorder %v202, 3
        %v271 = vsel %vm270, 1, 0
        %v272 = vlaneseq
        %v273 = vshrl.u32 %v272, 7
        %v274 = vsub.s32 0, %v273
        %v275 = vrot.slane %v271, %v274
        %vm276 = vcmp.eq.s32.totalorder %v275, 1
        %v277 = vsel %vm276, %v229, 0.0
        %278 = vadd.xlane.f32.xlu0 %v277
        %v279 = vpop.xlane.xlu0 %278
        %vm280 = vcmp.eq.s32.totalorder %v223, 3
        %v281 = vsel %vm280, %v279, 0.0
        %v282 = vadd.f32 %v269, %v281
        %vm283 = vcmp.eq.s32.totalorder %v202, 4
        %v284 = vsel %vm283, 1, 0
        %v285 = vlaneseq
        %v286 = vshrl.u32 %v285, 7
        %v287 = vsub.s32 0, %v286
        %v288 = vrot.slane %v284, %v287
        %vm289 = vcmp.eq.s32.totalorder %v288, 1
        %v290 = vsel %vm289, %v229, 0.0
        %291 = vadd.xlane.f32.xlu0 %v290
        %v292 = vpop.xlane.xlu0 %291
        %vm293 = vcmp.eq.s32.totalorder %v223, 4
        %v294 = vsel %vm293, %v292, 0.0
        %v295 = vadd.f32 %v282, %v294
        %vm296 = vcmp.eq.s32.totalorder %v202, 5
        %v297 = vsel %vm296, 1, 0
        %v298 = vlaneseq
        %v299 = vshrl.u32 %v298, 7
        %v300 = vsub.s32 0, %v299
        %v301 = vrot.slane %v297, %v300
        %vm302 = vcmp.eq.s32.totalorder %v301, 1
        %v303 = vsel %vm302, %v229, 0.0
        %304 = vadd.xlane.f32.xlu0 %v303
        %v305 = vpop.xlane.xlu0 %304
        %vm306 = vcmp.eq.s32.totalorder %v223, 5
        %v307 = vsel %vm306, %v305, 0.0
        %v308 = vadd.f32 %v295, %v307
        %309 = vst [vmem:[%s189] sm:$0xff] %v308
        %s310 = sand.u32 %s95, 1
        %s311 = scalar_lea.sflag [#allocation4], %s310
        %s312 = sand.u32 %s95, 1
        %s313 = smul.addr %s312, 8
        %s314 = scalar_lea.vmem [#allocation5], %s313
        // Predicated region
        $region37: #{tpu_custom_call.1} parent=27 // pred_check
          %p315 = pneg %p105
        $region38: #{tpu_custom_call.1} parent=27 // pred_check_branch
          %317 = sbr.rel (%p315) target = $region40
        $region39: #{tpu_custom_call.1} parent=27 // pred_region
          %s319 = ssub.s32 128, 128
          %320 = vsyncadd %s311, %s319
          %s321 = smul.addr %s23, 128
          %s322 = scalar_lea.hbm %s2, %s321
          %s324 = sshll.u32 %s314, 4
          %s325 = int_to_ptr.vmem [resolvable:$true] %s324
          %327 = dma.vmem_to_hbm [thread:$0]  %s325, 128, %s322, %s311
        $region40: #{tpu_custom_call.1} parent=27 // pred_fallthru
          _
      $region28: #{tpu_custom_call.1} parent=5 // pred_fallthru
        _
      %p328 = scmp.le.s32.totalorder 2, %s14
      // Predicated region
      $region41: #{tpu_custom_call.1} parent=5 // pred_check
        %p329 = pneg %p328
      $region42: #{tpu_custom_call.1} parent=5 // pred_check_branch
        %331 = sbr.rel (%p329) target = $region44
      $region43: #{tpu_custom_call.1} parent=5 // pred_region
        %s332 = ssub.s32 %s14, 2
        // Predicated region
        $region45: #{tpu_custom_call.1} parent=43 // pred_check
          %p333 = pneg %p111
        $region46: #{tpu_custom_call.1} parent=43 // pred_check_branch
          %335 = sbr.rel (%p333) target = $region48
        $region47: #{tpu_custom_call.1} parent=43 // pred_region
          %s336 = sand.u32 %s96, 1
          %s337 = scalar_lea.sflag [#allocation4], %s336
          %s338 = sand.u32 %s96, 1
          %s339 = smul.addr %s338, 8
          %s340 = scalar_lea.vmem [#allocation5], %s339
          %341 = dma.done %s337, 128
        $region48: #{tpu_custom_call.1} parent=43 // pred_fallthru
          _
      $region44: #{tpu_custom_call.1} parent=5 // pred_fallthru
        _
    $region6: #{tpu_custom_call.1} parent=1 // loop_footer
      %s18 = sadd.s32 1, %s14
    $region7: #{tpu_custom_call.1} parent=1 // loop_footer_branch
      %13 = sbr.rel target = $region3
    $region8: #{tpu_custom_call.1} parent=1 // loop_exit
      _
    %342 = vsyncpa [#allocation3], 1
    %s343 = scalar_lea.sflag [#allocation3], 1
    %344 = vsyncpa %s343, 1
    %345 = vsyncpa [#allocation4], 1
    %s346 = scalar_lea.sflag [#allocation4], 1
    %347 = vsyncpa %s346, 1

</llo_original>
